<compile_context>
chip_gen: v5e
topology: v5e:2x2
jax: 0.10.0
libtpu: 0.0.40
codegen_flags: <defaults>
</compile_context>

<pallas_src>
import jax
import jax.numpy as jnp
from jax.experimental import pallas as pl
from jax.experimental.pallas import tpu as pltpu


# Tile sizes: TT is a lane-dense multiple of 128; TB a multiple of 8 (int8
# sublanes pack 32-deep, 256 keeps tiles large but well under VMEM even on
# v7x's 64 MiB: a 256x2048 int8 tile is 512 KiB, double-buffered => 1 MiB).
_TB_DEFAULT = 256
_TT_DEFAULT = 2048

# Below this many output elements, use plain (fusible) XLA instead of Pallas.
_PALLAS_MIN_ELEMENTS = 1 << 20  # ~1 MiB of int8/bool output


def _seq_mask_kernel(len_ref, o_ref):
    # len_ref: (TB, 1) int32 in VMEM; o_ref: (TB, TT) int8 in VMEM.
    TB, TT = o_ref.shape
    # Offset the time index by this tile's position along the T grid axis.
    t0 = pl.program_id(1) * TT
    pos = t0 + jax.lax.broadcasted_iota(jnp.int32, (TB, TT), dimension=1)
    # Per-row comparison pos < length (pure VPU elementwise), stored as int8.
    o_ref[...] = (pos < len_ref[...]).astype(o_ref.dtype)


def _sequence_mask_pallas(x_length, T):
    B = x_length.shape[0]
    lengths2d = x_length.astype(jnp.int32).reshape(B, 1)

    # Block shapes must be (8,128)-divisible OR equal to the full array dim.
    TB = B if B < _TB_DEFAULT else _TB_DEFAULT
    TT = T if T < _TT_DEFAULT else _TT_DEFAULT
    grid = (pl.cdiv(B, TB), pl.cdiv(T, TT))

    mask_i8 = pl.pallas_call(
        _seq_mask_kernel,
        out_shape=jax.ShapeDtypeStruct((B, T), jnp.int8),
        grid=grid,
        in_specs=[
            # Tiny per-row-length block, reused across the whole T axis.
            pl.BlockSpec((TB, 1), lambda i, j: (i, 0)),
        ],
        out_specs=pl.BlockSpec((TB, TT), lambda i, j: (i, j)),
        compiler_params=pltpu.CompilerParams(
            dimension_semantics=("parallel", "parallel"),
        ),
        cost_estimate=pl.CostEstimate(
            flops=B * T, transcendentals=0, bytes_accessed=B * T + 4 * B
        ),
    )(lengths2d)

    # Boundary dtype parity with torch (bool); int8 0/1 -> bool is a cheap
    # 1 B/elem op that XLA can fuse into the consumer.
    return mask_i8.astype(jnp.bool_)


def sequence_mask(x, x_length, *, force_pallas=None):
    """Pallas equivalent of SequenceMask.forward(x, x_length)."""
    B = x_length.shape[0]
    T = x.shape[2]

    use_pallas = force_pallas
    if use_pallas is None:
        use_pallas = (B * T) >= _PALLAS_MIN_ELEMENTS

    if not use_pallas:
        # Tiny mask: let XLA fuse the broadcast-compare into its consumer.
        return (
            jnp.arange(T, dtype=jnp.int32)[None, :]
            < x_length.astype(jnp.int32)[:, None]
        )
    return _sequence_mask_pallas(x_length, T)


def _reference(x_length, T):
    return (
        jnp.arange(T, dtype=jnp.int32)[None, :]
        < x_length.astype(jnp.int32)[:, None]
    )


if __name__ == "__main__":
    key = jax.random.PRNGKey(0)

    # --- Case 1: the small demo shape from the module (auto-dispatch path).
    kx, kl = jax.random.split(key)
    B, C, T = 2, 4, 16
    x = jax.random.normal(kx, (B, C, T), dtype=jnp.float32)  # (B, C, T)
    x_length = jax.random.randint(kl, (B,), 1, T + 1, dtype=jnp.int32)
    mask = jax.block_until_ready(sequence_mask(x, x_length))
    assert mask.shape == (B, T) and mask.dtype == jnp.bool_
    assert bool(jnp.all(mask == _reference(x_length, T)))

    # --- Case 2: force the Pallas path on a small tiled shape (grid of T tiles).
    kx2, kl2 = jax.random.split(kl)
    B2, C2, T2 = 8, 4, 4096
    x2 = jnp.zeros((B2, C2, T2), dtype=jnp.float32)
    x_length2 = jax.random.randint(kl2, (B2,), 1, T2 + 1, dtype=jnp.int32)
    mask2 = jax.block_until_ready(sequence_mask(x2, x_length2, force_pallas=True))
    assert mask2.shape == (B2, T2) and mask2.dtype == jnp.bool_
    assert bool(jnp.all(mask2 == _reference(x_length2, T2)))

    # --- Case 3: ragged T (last tile partial) to exercise edge handling.
    B3, C3, T3 = 8, 4, 4100
    x3 = jnp.zeros((B3, C3, T3), dtype=jnp.float32)
    x_length3 = jax.random.randint(kx2, (B3,), 1, T3 + 1, dtype=jnp.int32)
    mask3 = jax.block_until_ready(sequence_mask(x3, x_length3, force_pallas=True))
    assert mask3.shape == (B3, T3) and mask3.dtype == jnp.bool_
    assert bool(jnp.all(mask3 == _reference(x_length3, T3)))

    print("KERNEL_OK")
</pallas_src>

<mosaic_0001>
module attributes {stable_mosaic.version = 11 : i64} {
  func.func @_seq_mask_kernel(%arg0: i32, %arg1: i32, %arg2: memref<8x1xi32, #tpu.memory_space<vmem>>, %arg3: memref<8x2048xi8, #tpu.memory_space<vmem>>) attributes {dimension_semantics = [#tpu.dimension_semantics<parallel>, #tpu.dimension_semantics<parallel>], iteration_bounds = array<i64: 1, 2>, scalar_prefetch = 0 : i64, scratch_operands = 0 : i64, tpu.core_type = #tpu.core_type<tc>, window_params = [{transform_indices = @transform_0, window_bounds = array<i64: 8, 1>}, {transform_indices = @transform_1, window_bounds = array<i64: 8, 2048>}]} {
    %c2048_i32 = arith.constant 2048 : i32
    %0 = arith.muli %arg1, %c2048_i32 : i32
    %1 = tpu.iota {dimensions = array<i32: 1>} : vector<8x2048xi32>
    %2 = vector.broadcast %0 : i32 to vector<8x2048xi32>
    %3 = arith.addi %2, %1 : vector<8x2048xi32>
    %c0 = arith.constant 0 : index
    %c0_0 = arith.constant 0 : index
    %4 = vector.load %arg2[%c0, %c0_0] : memref<8x1xi32, #tpu.memory_space<vmem>>, vector<8x1xi32>
    %5 = vector.broadcast %4 : vector<8x1xi32> to vector<8x2048xi32>
    %6 = arith.cmpi slt, %3, %5 : vector<8x2048xi32>
    %7 = arith.extui %6 : vector<8x2048xi1> to vector<8x2048xi8>
    %c0_1 = arith.constant 0 : index
    %c0_2 = arith.constant 0 : index
    %8 = vector.load %arg3[%c0_1, %c0_2] : memref<8x2048xi8, #tpu.memory_space<vmem>>, vector<8x2048xi8>
    tpu.vector_store %arg3[%c0_1, %c0_2], %7 {strides = array<i32>} : memref<8x2048xi8, #tpu.memory_space<vmem>>, vector<8x2048xi8>,
    return
  }
  func.func @transform_0(%arg0: i32, %arg1: i32) -> (i32, i32) {
    %c0_i32 = arith.constant 0 : i32
    %c0_i32_0 = arith.constant 0 : i32
    return %arg0, %c0_i32 : i32, i32
  }
  func.func @transform_1(%arg0: i32, %arg1: i32) -> (i32, i32) {
    %c0_i32 = arith.constant 0 : i32
    return %arg0, %arg1 : i32, i32
  }
}

</mosaic_0001>

<llo_original>
// kernel: tpu_custom_call.1
$region0: #{tpu_custom_call.1}
  #allocation0 [shape = 'u32[]', space=smem, size = 0x4, offset = 0x4, fixed_abs, tag = 'smem constant byte address 0x4 - core index']
  #allocation1 [shape = 'u32[72,128]{1,0:T(1,128)}', space=vmem, size = 0x9000, scoped, tag = 'internal scratch']
  %s0 = inlined_call_operand.vmem [shape: s32[8,1], index: 0, kind: input, shape index: {}]
  %s1 = inlined_call_operand.hbm [shape: s8[8,4096], index: 1, kind: output, shape index: {}]
  %s2 = sld [smem:[#allocation0]]
  $region37: #{tpu_custom_call.1} parent=0
    _
  %s4 = ssub.s32 1, %s2
  %s5 = scalar_select 0, %s4, %s2
  $region1: #{tpu_custom_call.1} parent=0
    #allocation2 [shape = 'u8[32768]{0}', space=vmem, size = 0x8000, scoped, tag = 'output window, operand 0']
    #allocation3 [shape = 's32[2]{0}', space=sflag, size = 0x8, scoped, tag = 'scoped memory for tpu_custom_call.1']
    %6 = vsyncpa [#allocation3], 0
    %s7 = scalar_lea.sflag [#allocation3], 1
    %8 = vsyncpa %s7, 0
    loop: start=0, step=1, limit=4
    $region2: #{tpu_custom_call.1} parent=1 // loop_pre_header
      _
    $region3: #{tpu_custom_call.1} parent=1 // loop_header
      %s10 = sphi 0, %s14
      %p11 = scmp.ge.s32.totalorder %s10, 4
      %s17 = sphi 0, %s29
      %s18 = sphi 0, %s25
      %s19 = sphi 0, %s17
      %s20 = sphi 0, %s18
      %s21 = sphi 0, %s19
      %s22 = sphi 0, %s20
      %s32 = sphi 0, %s34
      %s35 = sphi 0, %s32
      %s36 = sphi 0, %s35
      %s52 = sphi 0, %s36
      %s60 = sphi 0, %s62
      %s63 = sphi 0, %s60
      %s64 = sphi 0, %s63
      %s80 = sphi 0, %s64
    $region4: #{tpu_custom_call.1} parent=1 // loop_header_branch
      %13 = sbr.rel (%p11) target = $region8
    $region5: #{tpu_custom_call.1} parent=1 // loop_body
      %s15 = ssub.s32 %s10, 1
      %s16 = ssub.s32 %s10, 2
      %s23 = sadd.s32 1, %s18
      %p24 = scmp.ge.s32.totalorder %s23, 2
      %s25 = scalar_select %p24, 0, %s23
      %s26 = sadd.s32 1, %s17
      %s27 = scalar_select %p24, %s26, %s17
      %p28 = scmp.ge.s32.totalorder %s27, 1
      %s29 = scalar_select %p28, 0, %s27
      %s30 = ssub.s32 %s17, %s29
      %p31 = scmp.eq.s32.totalorder %s30, 0
      %s33 = sadd.s32 %s32, 1
      %s34 = scalar_select %p31, %s32, %s33
      %p37 = pneg %p31
      %p38 = scmp.eq.s32.totalorder %s10, 1
      %p39 = por %p37, %p38
      %p40 = scmp.ne.s32.totalorder %s32, %s35
      %p41 = scmp.eq.s32.totalorder %s10, 0
      %p42 = por %p40, %p41
      %p43 = scmp.ne.s32.totalorder %s32, %s35
      %p44 = scmp.eq.s32.totalorder %s15, 1
      %p45 = por %p43, %p44
      %p46 = scmp.ne.s32.totalorder %s35, %s36
      %p47 = scmp.eq.s32.totalorder %s15, 0
      %p48 = por %p46, %p47
      %p49 = scmp.ne.s32.totalorder %s35, %s36
      %p50 = scmp.eq.s32.totalorder %s16, 1
      %p51 = por %p49, %p50
      %p53 = scmp.ne.s32.totalorder %s36, %s52
      %p54 = scmp.eq.s32.totalorder %s16, 0
      %p55 = por %p53, %p54
      %s56 = ssub.s32 %s17, %s29
      %s57 = ssub.s32 %s18, %s25
      %s58 = sor.u32 %s56, %s57
      %p59 = scmp.eq.s32.totalorder %s58, 0
      %s61 = sadd.s32 %s60, 1
      %s62 = scalar_select %p59, %s60, %s61
      %p65 = pneg %p59
      %p66 = scmp.eq.s32.totalorder %s10, 1
      %p67 = por %p65, %p66
      %p68 = scmp.ne.s32.totalorder %s60, %s63
      %p69 = scmp.eq.s32.totalorder %s10, 0
      %p70 = por %p68, %p69
      %p71 = scmp.ne.s32.totalorder %s60, %s63
      %p72 = scmp.eq.s32.totalorder %s15, 1
      %p73 = por %p71, %p72
      %p74 = scmp.ne.s32.totalorder %s63, %s64
      %p75 = scmp.eq.s32.totalorder %s15, 0
      %p76 = por %p74, %p75
      %p77 = scmp.ne.s32.totalorder %s63, %s64
      %p78 = scmp.eq.s32.totalorder %s16, 1
      %p79 = por %p77, %p78
      %p81 = scmp.ne.s32.totalorder %s64, %s80
      %p82 = scmp.eq.s32.totalorder %s16, 0
      %p83 = por %p81, %p82
      %p84 = scmp.le.s32.totalorder 1, %s10
      %p85 = scmp.lt.s32.totalorder %s10, 3
      %p86 = pnand %p84, %p85
      %p87 = pneg %p86
      // Predicated region
      $region9: #{tpu_custom_call.1} parent=5 // pred_check
        _
      $region10: #{tpu_custom_call.1} parent=5 // pred_check_branch
        %89 = sbr.rel (%p86) target = $region12
      $region11: #{tpu_custom_call.1} parent=5 // pred_region
        %s90 = ssub.s32 %s10, 1
        // Predicated region
        $region13: #{tpu_custom_call.1} parent=11 // pred_check
          %p91 = pneg %p48
        $region14: #{tpu_custom_call.1} parent=11 // pred_check_branch
          %93 = sbr.rel (%p91) target = $region16
        $region15: #{tpu_custom_call.1} parent=11 // pred_region
          %p94 = scmp.lt.s32.totalorder %s19, 0
          %s95 = scalar_select %p94, %s19, 0
          %s96 = smul.addr %s95, 8
          %s97 = scalar_lea.vmem %s0, %s96
        $region16: #{tpu_custom_call.1} parent=11 // pred_fallthru
          _
      $region12: #{tpu_custom_call.1} parent=5 // pred_fallthru
        _
      %p98 = scmp.lt.s32.totalorder %s10, 2
      // Predicated region
      $region17: #{tpu_custom_call.1} parent=5 // pred_check
        %p99 = pneg %p98
      $region18: #{tpu_custom_call.1} parent=5 // pred_check_branch
        %101 = sbr.rel (%p99) target = $region20
      $region19: #{tpu_custom_call.1} parent=5 // pred_region
        _
      $region20: #{tpu_custom_call.1} parent=5 // pred_fallthru
        _
      %p102 = scmp.le.s32.totalorder 1, %s10
      %p103 = scmp.lt.s32.totalorder %s10, 3
      %p104 = pnand %p102, %p103
      %p105 = pneg %p104
      // Predicated region
      $region21: #{tpu_custom_call.1} parent=5 // pred_check
        _
      $region22: #{tpu_custom_call.1} parent=5 // pred_check_branch
        %107 = sbr.rel (%p104) target = $region24
      $region23: #{tpu_custom_call.1} parent=5 // pred_region
        %s108 = ssub.s32 %s10, 1
        %p109 = scmp.lt.s32.totalorder %s19, 0
        %s110 = scalar_select %p109, %s19, 0
        %s111 = smul.addr %s110, 8
        %s112 = scalar_lea.vmem %s0, %s111
        %p113 = pneg %p48
        %p114 = pneg %p45
        %p115 = pneg %p76
        %p116 = pneg %p73
        %s117 = sand.u32 %s63, 1
        %s118 = scalar_lea.sflag [#allocation3], %s117
        %s119 = sand.u32 %s63, 1
        %s120 = smul.addr %s119, 32
        %s121 = scalar_lea.vmem [#allocation2], %s120
        %p122 = scmp.lt.s32.totalorder %s19, 0
        %s123 = scalar_select %p122, %s19, 0
        %s124 = smul.addr %s123, 8
        %s125 = scalar_lea.vmem %s0, %s124
        %s126 = smul.u32 16, %s20
        %s129 = smul.u32 %s20, 2048
        %v130 = vlaneseq
        %v131 = vand.u32 %v130, 127
        %v132 = vadd.s32 %v131, 128
        %v133 = vadd.s32 %v131, 256
        %v134 = vadd.s32 %v131, 384
        %v135 = vadd.s32 %v131, 512
        %v136 = vadd.s32 %v131, 640
        %v137 = vadd.s32 %v131, 768
        %v138 = vadd.s32 %v131, 896
        %v139 = vadd.s32 %v131, 1024
        %v140 = vadd.s32 %v131, 1152
        %v141 = vadd.s32 %v131, 1280
        %v142 = vadd.s32 %v131, 1408
        %v143 = vadd.s32 %v131, 1536
        %v144 = vadd.s32 %v131, 1664
        %v145 = vadd.s32 %v131, 1792
        %v146 = vadd.s32 %v131, 1920
        %v147 = vstv %s129
        %v148 = vadd.s32 %v147, %v131
        %v149 = vadd.s32 %v147, %v132
        %v150 = vadd.s32 %v147, %v133
        %v151 = vadd.s32 %v147, %v134
        %v152 = vadd.s32 %v147, %v135
        %v153 = vadd.s32 %v147, %v136
        %v154 = vadd.s32 %v147, %v137
        %v155 = vadd.s32 %v147, %v138
        %v156 = vadd.s32 %v147, %v139
        %v157 = vadd.s32 %v147, %v140
        %v158 = vadd.s32 %v147, %v141
        %v159 = vadd.s32 %v147, %v142
        %v160 = vadd.s32 %v147, %v143
        %v161 = vadd.s32 %v147, %v144
        %v162 = vadd.s32 %v147, %v145
        %v163 = vadd.s32 %v147, %v146
        %v164 = vld [vmem:[%s125] sm:$0xff]
        %165 = vset.pattern.permute.xlu0 0
        %166 = vperm.xlu0 %165, %v164
        %v167 = vpop.permute.xlu0 %166
        %vm168 = vcmp.lt.s32.totalorder %v148, %v167
        %vm169 = vcmp.lt.s32.totalorder %v149, %v167
        %vm170 = vcmp.lt.s32.totalorder %v150, %v167
        %vm171 = vcmp.lt.s32.totalorder %v151, %v167
        %vm172 = vcmp.lt.s32.totalorder %v152, %v167
        %vm173 = vcmp.lt.s32.totalorder %v153, %v167
        %vm174 = vcmp.lt.s32.totalorder %v154, %v167
        %vm175 = vcmp.lt.s32.totalorder %v155, %v167
        %vm176 = vcmp.lt.s32.totalorder %v156, %v167
        %vm177 = vcmp.lt.s32.totalorder %v157, %v167
        %vm178 = vcmp.lt.s32.totalorder %v158, %v167
        %vm179 = vcmp.lt.s32.totalorder %v159, %v167
        %vm180 = vcmp.lt.s32.totalorder %v160, %v167
        %vm181 = vcmp.lt.s32.totalorder %v161, %v167
        %vm182 = vcmp.lt.s32.totalorder %v162, %v167
        %vm183 = vcmp.lt.s32.totalorder %v163, %v167
        %vm184 = vmpackc.low %vm168, %vm168
        %v185 = vsel %vm184, 16711935, 0
        %v186 = vsel %vm184, 16711935, 0
        %v187 = vpack.c.b8 %v186, %v185
        %vm188 = vnez %v187
        %vm189 = vmpackc.low %vm169, %vm169
        %v190 = vsel %vm189, 16711935, 0
        %v191 = vsel %vm189, 16711935, 0
        %v192 = vpack.c.b8 %v191, %v190
        %vm193 = vnez %v192
        %vm194 = vmpackc.low %vm170, %vm170
        %v195 = vsel %vm194, 16711935, 0
        %v196 = vsel %vm194, 16711935, 0
        %v197 = vpack.c.b8 %v196, %v195
        %vm198 = vnez %v197
        %vm199 = vmpackc.low %vm171, %vm171
        %v200 = vsel %vm199, 16711935, 0
        %v201 = vsel %vm199, 16711935, 0
        %v202 = vpack.c.b8 %v201, %v200
        %vm203 = vnez %v202
        %vm204 = vmpackc.low %vm172, %vm172
        %v205 = vsel %vm204, 16711935, 0
        %v206 = vsel %vm204, 16711935, 0
        %v207 = vpack.c.b8 %v206, %v205
        %vm208 = vnez %v207
        %vm209 = vmpackc.low %vm173, %vm173
        %v210 = vsel %vm209, 16711935, 0
        %v211 = vsel %vm209, 16711935, 0
        %v212 = vpack.c.b8 %v211, %v210
        %vm213 = vnez %v212
        %vm214 = vmpackc.low %vm174, %vm174
        %v215 = vsel %vm214, 16711935, 0
        %v216 = vsel %vm214, 16711935, 0
        %v217 = vpack.c.b8 %v216, %v215
        %vm218 = vnez %v217
        %vm219 = vmpackc.low %vm175, %vm175
        %v220 = vsel %vm219, 16711935, 0
        %v221 = vsel %vm219, 16711935, 0
        %v222 = vpack.c.b8 %v221, %v220
        %vm223 = vnez %v222
        %vm224 = vmpackc.low %vm176, %vm176
        %v225 = vsel %vm224, 16711935, 0
        %v226 = vsel %vm224, 16711935, 0
        %v227 = vpack.c.b8 %v226, %v225
        %vm228 = vnez %v227
        %vm229 = vmpackc.low %vm177, %vm177
        %v230 = vsel %vm229, 16711935, 0
        %v231 = vsel %vm229, 16711935, 0
        %v232 = vpack.c.b8 %v231, %v230
        %vm233 = vnez %v232
        %vm234 = vmpackc.low %vm178, %vm178
        %v235 = vsel %vm234, 16711935, 0
        %v236 = vsel %vm234, 16711935, 0
        %v237 = vpack.c.b8 %v236, %v235
        %vm238 = vnez %v237
        %vm239 = vmpackc.low %vm179, %vm179
        %v240 = vsel %vm239, 16711935, 0
        %v241 = vsel %vm239, 16711935, 0
        %v242 = vpack.c.b8 %v241, %v240
        %vm243 = vnez %v242
        %vm244 = vmpackc.low %vm180, %vm180
        %v245 = vsel %vm244, 16711935, 0
        %v246 = vsel %vm244, 16711935, 0
        %v247 = vpack.c.b8 %v246, %v245
        %vm248 = vnez %v247
        %vm249 = vmpackc.low %vm181, %vm181
        %v250 = vsel %vm249, 16711935, 0
        %v251 = vsel %vm249, 16711935, 0
        %v252 = vpack.c.b8 %v251, %v250
        %vm253 = vnez %v252
        %vm254 = vmpackc.low %vm182, %vm182
        %v255 = vsel %vm254, 16711935, 0
        %v256 = vsel %vm254, 16711935, 0
        %v257 = vpack.c.b8 %v256, %v255
        %vm258 = vnez %v257
        %vm259 = vmpackc.low %vm183, %vm183
        %v260 = vsel %vm259, 16711935, 0
        %v261 = vsel %vm259, 16711935, 0
        %v262 = vpack.c.b8 %v261, %v260
        %vm263 = vnez %v262
        %v264 = vsel %vm188, 16843009, 0
        %v265 = vsel %vm193, 16843009, 0
        %v266 = vsel %vm198, 16843009, 0
        %v267 = vsel %vm203, 16843009, 0
        %v268 = vsel %vm208, 16843009, 0
        %v269 = vsel %vm213, 16843009, 0
        %v270 = vsel %vm218, 16843009, 0
        %v271 = vsel %vm223, 16843009, 0
        %v272 = vsel %vm228, 16843009, 0
        %v273 = vsel %vm233, 16843009, 0
        %v274 = vsel %vm238, 16843009, 0
        %v275 = vsel %vm243, 16843009, 0
        %v276 = vsel %vm248, 16843009, 0
        %v277 = vsel %vm253, 16843009, 0
        %v278 = vsel %vm258, 16843009, 0
        %v279 = vsel %vm263, 16843009, 0
        %v280 = vunpack.c.0.s8 %v264
        %v281 = vunpack.c.0.s8 %v265
        %v282 = vunpack.c.0.s8 %v266
        %v283 = vunpack.c.0.s8 %v267
        %v284 = vunpack.c.0.s8 %v268
        %v285 = vunpack.c.0.s8 %v269
        %v286 = vunpack.c.0.s8 %v270
        %v287 = vunpack.c.0.s8 %v271
        %v288 = vunpack.c.0.s8 %v272
        %v289 = vunpack.c.0.s8 %v273
        %v290 = vunpack.c.0.s8 %v274
        %v291 = vunpack.c.0.s8 %v275
        %v292 = vunpack.c.0.s8 %v276
        %v293 = vunpack.c.0.s8 %v277
        %v294 = vunpack.c.0.s8 %v278
        %v295 = vunpack.c.0.s8 %v279
        %v296 = vpack.c.b16 %v281, %v280
        %v297 = vpack.c.b16 %v283, %v282
        %v298 = vpack.c.b8 %v297, %v296
        %v299 = vpack.c.b16 %v285, %v284
        %v300 = vpack.c.b16 %v287, %v286
        %v301 = vpack.c.b8 %v300, %v299
        %v302 = vpack.c.b16 %v289, %v288
        %v303 = vpack.c.b16 %v291, %v290
        %v304 = vpack.c.b8 %v303, %v302
        %v305 = vpack.c.b16 %v293, %v292
        %v306 = vpack.c.b16 %v295, %v294
        %v307 = vpack.c.b8 %v306, %v305
        %308 = vst [vmem:[%s121] sm:$0xff] %v298
        %309 = vst [vmem:[%s121 + $0x8] sm:$0xff] %v301
        %310 = vst [vmem:[%s121 + $0x10] sm:$0xff] %v304
        %311 = vst [vmem:[%s121 + $0x18] sm:$0xff] %v307
        %s312 = sand.u32 %s63, 1
        %s313 = scalar_lea.sflag [#allocation3], %s312
        %s314 = sand.u32 %s63, 1
        %s315 = smul.addr %s314, 32
        %s316 = scalar_lea.vmem [#allocation2], %s315
        // Predicated region
        $region25: #{tpu_custom_call.1} parent=23 // pred_check
          %p317 = pneg %p73
        $region26: #{tpu_custom_call.1} parent=23 // pred_check_branch
          %319 = sbr.rel (%p317) target = $region28
        $region27: #{tpu_custom_call.1} parent=23 // pred_region
          %s320 = smul.u32 16, %s20
          %322 = vsyncadd %s313, 0
          %s323 = smul.addr %s19, 32
          %s324 = sadd.s32 %s320, %s323
          %s325 = smul.addr %s324, 2
          %s326 = scalar_lea.hbm %s1, %s325
          %s328 = sshll.u32 %s316, 4
          %s329 = int_to_ptr.vmem [resolvable:$true] %s328
          %s330 = sshll.u32 %s326, 4
          %s331 = int_to_ptr.hbm [resolvable:$true] %s330
          %333 = dma.vmem_to_hbm [thread:$0]  %s329, 512, %s331, %s313
        $region28: #{tpu_custom_call.1} parent=23 // pred_fallthru
          _
      $region24: #{tpu_custom_call.1} parent=5 // pred_fallthru
        _
      %p334 = scmp.le.s32.totalorder 2, %s10
      // Predicated region
      $region29: #{tpu_custom_call.1} parent=5 // pred_check
        %p335 = pneg %p334
      $region30: #{tpu_custom_call.1} parent=5 // pred_check_branch
        %337 = sbr.rel (%p335) target = $region32
      $region31: #{tpu_custom_call.1} parent=5 // pred_region
        %s338 = ssub.s32 %s10, 2
        // Predicated region
        $region33: #{tpu_custom_call.1} parent=31 // pred_check
          %p339 = pneg %p79
        $region34: #{tpu_custom_call.1} parent=31 // pred_check_branch
          %341 = sbr.rel (%p339) target = $region36
        $region35: #{tpu_custom_call.1} parent=31 // pred_region
          %s342 = sand.u32 %s64, 1
          %s343 = scalar_lea.sflag [#allocation3], %s342
          %s344 = sand.u32 %s64, 1
          %s345 = smul.addr %s344, 32
          %s346 = scalar_lea.vmem [#allocation2], %s345
          %348 = dma.done %s343, 512
        $region36: #{tpu_custom_call.1} parent=31 // pred_fallthru
          _
      $region32: #{tpu_custom_call.1} parent=5 // pred_fallthru
        _
    $region6: #{tpu_custom_call.1} parent=1 // loop_footer
      %s14 = sadd.s32 1, %s10
    $region7: #{tpu_custom_call.1} parent=1 // loop_footer_branch
      %9 = sbr.rel target = $region3
    $region8: #{tpu_custom_call.1} parent=1 // loop_exit
      _
    %349 = vsyncpa [#allocation3], 1
    %s350 = scalar_lea.sflag [#allocation3], 1
    %351 = vsyncpa %s350, 1

</llo_original>
